<compile_context>
chip_gen: v7x
topology: tpu7x:2x2x1
jax: 0.10.0
libtpu: 0.0.40
codegen_flags: <defaults>
</compile_context>

<pallas_src>
import functools

import jax
import jax.numpy as jnp
from jax import lax
from jax.experimental import pallas as pl
from jax.experimental.pallas import tpu as pltpu

LANE = 128
_VMEM_BUDGET = 32 * 1024 * 1024        # v7x scoped default; also safe on v5e/v6e
_TARGET_BLOCK_BYTES = 4 * 1024 * 1024  # ~8 MiB of x stream at depth-2 buffering


def _round_up(n: int, m: int) -> int:
    return ((n + m - 1) // m) * m


def _linear_kernel(x_ref, w_ref, b_ref, o_ref):
    # x_ref: (TILE_B, D) VMEM (streamed), w_ref: (1, D) VMEM (resident),
    # b_ref: (1,) SMEM, o_ref: (1, TILE_B) VMEM (lane axis = batch).
    y = lax.dot_general(
        w_ref[...], x_ref[...],
        dimension_numbers=(((1,), (1,)), ((), ())),   # contract D with D, no w.T
        preferred_element_type=jnp.float32,
    )                                                 # (1, TILE_B), f32 accum
    o_ref[...] = (y + b_ref[0]).astype(o_ref.dtype)


def _linear_kernel_dtiled(x_ref, w_ref, b_ref, o_ref, acc_ref, *, d_rem):
    # Grid: (batch tiles, feature tiles); feature (reduction) axis is last.
    k = pl.program_id(1)
    n_k = pl.num_programs(1)

    @pl.when(k == 0)
    def _():
        acc_ref[...] = jnp.zeros_like(acc_ref)

    x = x_ref[...]
    if d_rem:  # static: only the last feature block is partial
        col = lax.broadcasted_iota(jnp.int32, x.shape, dimension=1)
        valid = jnp.where(k == n_k - 1, d_rem, x.shape[1])
        x = jnp.where(col < valid, x, jnp.zeros_like(x))

    acc_ref[...] += lax.dot_general(
        w_ref[...], x,
        dimension_numbers=(((1,), (1,)), ((), ())),
        preferred_element_type=jnp.float32,
    )

    @pl.when(k == n_k - 1)
    def _():
        o_ref[...] = (acc_ref[...] + b_ref[0]).astype(o_ref.dtype)


def linear_regression_forward(x, weight, bias, *, _force_tile_d=None):
    """x: (B, D), weight: (1, D), bias: (1,) -> (B, 1). Matches nn.Linear(D, 1).

    `_force_tile_d` (multiple of 128) is a test hook to exercise the wide-D
    (feature-tiled) path at small shapes.
    """
    B, D = x.shape
    dtype = x.dtype
    itemsize = jnp.dtype(dtype).itemsize

    d_pad = _round_up(D, LANE)          # real per-row VMEM footprint (lane padding)
    row_bytes = d_pad * itemsize

    # Feature-tile only when even a minimal 128-row, depth-2 buffered block of
    # the full feature dim would consume more than ~half the VMEM budget.
    d_tiled = (_force_tile_d is not None) or (2 * LANE * row_bytes > _VMEM_BUDGET // 2)

    cost = pl.CostEstimate(
        flops=2 * B * D,
        transcendentals=0,
        bytes_accessed=itemsize * (B * D + D + 1 + B),
    )

    if not d_tiled:
        # ---- common path: single feature block, stream x over the batch ----
        tile_b = max(LANE, (_TARGET_BLOCK_BYTES // row_bytes) // LANE * LANE)
        if B <= tile_b:
            tile_b = B                  # one exact block, no partial windows
        n_b = pl.cdiv(B, tile_b)        # ragged tail -> Pallas partial block (no pad)
        out_pad = n_b * tile_b          # only the tiny output is padded

        y = pl.pallas_call(
            _linear_kernel,
            out_shape=jax.ShapeDtypeStruct((1, out_pad), dtype),
            grid_spec=pltpu.PrefetchScalarGridSpec(
                num_scalar_prefetch=0,
                grid=(n_b,),
                in_specs=[
                    pl.BlockSpec((tile_b, D), lambda i: (i, 0)),        # streamed x
                    pl.BlockSpec((1, D), lambda i: (0, 0)),             # resident w
                    pl.BlockSpec(memory_space=pltpu.MemorySpace.SMEM),  # bias scalar
                ],
                out_specs=pl.BlockSpec((1, tile_b), lambda i: (0, i)),  # lane-dense
            ),
            compiler_params=pltpu.CompilerParams(
                dimension_semantics=("parallel",),    # v7x: batch split over 2 TCs
                vmem_limit_bytes=_VMEM_BUDGET,
            ),
            cost_estimate=cost,
        )(x, weight, bias)
        return y[0, :B].reshape(B, 1)

    # ---- wide-D path: (batch, feature) grid with f32 accumulator in VMEM ----
    if _force_tile_d is not None:
        tile_d = _force_tile_d
    else:
        tile_d = max(LANE, (_TARGET_BLOCK_BYTES // (512 * itemsize)) // LANE * LANE)
    tile_d = min(tile_d, d_pad)

    tile_b = 512
    if B <= tile_b:
        tile_b = B
    n_b = pl.cdiv(B, tile_b)
    n_k = pl.cdiv(D, tile_d)
    d_rem = D % tile_d                  # static; 0 => last feature block is full
    out_pad = n_b * tile_b

    # Zero-pad the tiny (1, D) weight to whole feature tiles so its last block
    # never reads OOB garbage (x is never padded; its tail is masked in-kernel).
    k_pad = n_k * tile_d
    if k_pad != D:
        weight = jnp.pad(weight, ((0, 0), (0, k_pad - D)))

    kernel = functools.partial(_linear_kernel_dtiled, d_rem=d_rem)
    y = pl.pallas_call(
        kernel,
        out_shape=jax.ShapeDtypeStruct((1, out_pad), dtype),
        grid_spec=pltpu.PrefetchScalarGridSpec(
            num_scalar_prefetch=0,
            grid=(n_b, n_k),                                        # reduction last
            in_specs=[
                pl.BlockSpec((tile_b, tile_d), lambda i, k: (i, k)),
                pl.BlockSpec((1, tile_d), lambda i, k: (0, k)),
                pl.BlockSpec(memory_space=pltpu.MemorySpace.SMEM),
            ],
            out_specs=pl.BlockSpec((1, tile_b), lambda i, k: (0, i)),
            scratch_shapes=[pltpu.VMEM((1, tile_b), jnp.float32)],
        ),
        compiler_params=pltpu.CompilerParams(
            dimension_semantics=("parallel", "arbitrary"),
            vmem_limit_bytes=_VMEM_BUDGET,
        ),
        cost_estimate=cost,
    )(x, weight, bias)
    return y[0, :B].reshape(B, 1)


if __name__ == "__main__":
    key = jax.random.PRNGKey(0)
    kx, kw, kb, k2x, k2w, k2b, k3x, k3w, k3b = jax.random.split(key, 9)

    # 1) Small demo shapes consistent with nn.Linear(input_dim, 1).
    batch, input_dim = 8, 32
    x = jax.random.normal(kx, (batch, input_dim), dtype=jnp.float32)
    bound = 1.0 / jnp.sqrt(jnp.float32(input_dim))
    weight = jax.random.uniform(kw, (1, input_dim), jnp.float32, -bound, bound)
    bias = jax.random.uniform(kb, (1,), jnp.float32, -bound, bound)

    y = jax.block_until_ready(linear_regression_forward(x, weight, bias))
    y_ref = x @ weight.T + bias
    assert y.shape == (batch, 1)
    assert jnp.allclose(y, y_ref, atol=1e-5, rtol=1e-5)

    # 2) Larger batch: exercises multi-tile streaming + ragged tail (no jnp.pad).
    B2, D2 = 7000, 32
    x2 = jax.random.normal(k2x, (B2, D2), dtype=jnp.float32)
    w2 = jax.random.uniform(k2w, (1, D2), jnp.float32, -bound, bound)
    b2 = jax.random.uniform(k2b, (1,), jnp.float32, -bound, bound)
    y2 = jax.block_until_ready(linear_regression_forward(x2, w2, b2))
    y2_ref = x2 @ w2.T + b2
    assert y2.shape == (B2, 1)
    assert jnp.allclose(y2, y2_ref, atol=1e-4, rtol=1e-4)

    # 3) Feature-tiled (wide-D guard) path, forced at small shape: exercises the
    #    accumulator, reduction-axis grid and tail-column masking (320 % 128 != 0).
    B3, D3 = 300, 320
    bound3 = 1.0 / jnp.sqrt(jnp.float32(D3))
    x3 = jax.random.normal(k3x, (B3, D3), dtype=jnp.float32)
    w3 = jax.random.uniform(k3w, (1, D3), jnp.float32, -bound3, bound3)
    b3 = jax.random.uniform(k3b, (1,), jnp.float32, -bound3, bound3)
    y3 = jax.block_until_ready(
        linear_regression_forward(x3, w3, b3, _force_tile_d=128))
    y3_ref = x3 @ w3.T + b3
    assert y3.shape == (B3, 1)
    assert jnp.allclose(y3, y3_ref, atol=1e-4, rtol=1e-4)

    print("KERNEL_OK")
</pallas_src>

<mosaic_0001>
module attributes {stable_mosaic.version = 11 : i64} {
  func.func @_linear_kernel(%arg0: i32, %arg1: memref<8x32xf32, #tpu.memory_space<vmem>>, %arg2: memref<1x32xf32, #tpu.memory_space<vmem>>, %arg3: memref<1xf32, #tpu.memory_space<smem>>, %arg4: memref<1x8xf32, #tpu.memory_space<vmem>>) attributes {dimension_semantics = [#tpu.dimension_semantics<parallel>], iteration_bounds = array<i64: 1>, scalar_prefetch = 0 : i64, scratch_operands = 0 : i64, tpu.core_type = #tpu.core_type<tc>, window_params = [{transform_indices = @transform_0, window_bounds = array<i64: 8, 32>}, {pipeline_mode = #tpu.pipeline_mode<synchronous>, transform_indices = @transform_1, window_bounds = array<i64: 1, 32>}, {transform_indices = @transform_2, window_bounds = array<i64: 1>}, {transform_indices = @transform_3, window_bounds = array<i64: 1, 8>}]} {
    %c0 = arith.constant 0 : index
    %c0_0 = arith.constant 0 : index
    %0 = vector.load %arg2[%c0, %c0_0] : memref<1x32xf32, #tpu.memory_space<vmem>>, vector<1x32xf32>
    %c0_1 = arith.constant 0 : index
    %c0_2 = arith.constant 0 : index
    %1 = vector.load %arg1[%c0_1, %c0_2] : memref<8x32xf32, #tpu.memory_space<vmem>>, vector<8x32xf32>
    %cst = arith.constant dense<0.000000e+00> : vector<1x8xf32>
    %2 = tpu.matmul %0, %1, %cst {dimension_numbers = #tpu.dot_dimension_numbers<[1], [1], [0], [0], [0, 0, 1, 0], [], []>} : vector<1x32xf32>, vector<8x32xf32>, vector<1x8xf32> -> vector<1x8xf32>
    %c0_3 = arith.constant 0 : index
    %3 = memref.load %arg3[%c0_3] : memref<1xf32, #tpu.memory_space<smem>>
    %4 = vector.broadcast %3 : f32 to vector<1x8xf32>
    %5 = arith.addf %2, %4 : vector<1x8xf32>
    %c0_4 = arith.constant 0 : index
    %c0_5 = arith.constant 0 : index
    %6 = vector.load %arg4[%c0_4, %c0_5] : memref<1x8xf32, #tpu.memory_space<vmem>>, vector<1x8xf32>
    tpu.vector_store %arg4[%c0_4, %c0_5], %5 {strides = array<i32>} : memref<1x8xf32, #tpu.memory_space<vmem>>, vector<1x8xf32>,
    return
  }
  func.func @transform_0(%arg0: i32) -> (i32, i32) {
    %c0_i32 = arith.constant 0 : i32
    %c0_i32_0 = arith.constant 0 : i32
    return %arg0, %c0_i32 : i32, i32
  }
  func.func @transform_1(%arg0: i32) -> (i32, i32) {
    %c0_i32 = arith.constant 0 : i32
    %c0_i32_0 = arith.constant 0 : i32
    %c0_i32_1 = arith.constant 0 : i32
    return %c0_i32, %c0_i32_0 : i32, i32
  }
  func.func @transform_2(%arg0: i32) -> i32 {
    %c0_i32 = arith.constant 0 : i32
    %c0_i32_0 = arith.constant 0 : i32
    return %c0_i32 : i32
  }
  func.func @transform_3(%arg0: i32) -> (i32, i32) {
    %c0_i32 = arith.constant 0 : i32
    %c0_i32_0 = arith.constant 0 : i32
    return %c0_i32, %arg0 : i32, i32
  }
}

</mosaic_0001>

<llo_original>
// kernel: tpu_custom_call.1
$region0: #{tpu_custom_call.1}
  #allocation0 [shape = 'u32[]', space=smem, size = 0x4, offset = 0x4, fixed_abs, tag = 'smem constant byte address 0x4 - core index']
  #allocation1 [shape = 'u32[144,128]{1,0:T(1,128)}', space=vmem, size = 0x12000, scoped, tag = 'internal scratch']
  #allocation2 [shape = 'f32[1]{0:T(128)S(6)}', space=smem, size = 0x200, scoped, tag = 'scoped memory for tpu_custom_call.1']
  %s0 = inlined_call_operand.hbm [shape: f32[8,32], index: 0, kind: input, shape index: {}]
  %s1 = inlined_call_operand.vmem [shape: f32[1,32], index: 1, kind: input, shape index: {}]
  %s2 = inlined_call_operand.<no memory space> [shape: f32[1], index: 2, kind: input, shape index: {}]
  %s3 = inlined_call_operand.hbm [shape: f32[1,8], index: 3, kind: output, shape index: {}]
  %s4 = sld [smem:[#allocation0]]
  $region26: #{tpu_custom_call.1} parent=0
    _
  %s6 = ssub.s32 1, %s4
  %s7 = scalar_select 0, %s6, %s4
  %8 = sst [smem:[#allocation2]] %s2
  $region1: #{tpu_custom_call.1} parent=0
    #allocation3 [shape = 'u8[4096]{0}', space=vmem, size = 0x1000, scoped, tag = 'input window, operand 0, single buffered']
    #allocation4 [shape = 's32[1]{0}', space=sflag, size = 0x4, scoped, tag = 'scoped memory for tpu_custom_call.1']
    #allocation5 [shape = 's32[1]{0}', space=sflag, size = 0x4, scoped, tag = 'scoped memory for tpu_custom_call.1']
    #allocation6 [shape = 'u8[512]{0}', space=vmem, size = 0x400, scoped, tag = 'output window, operand 0, single buffered']
    %9 = vsyncpa [#allocation4], 0
    %10 = vsyncpa [#allocation5], 0
    // Predicated region
    $region2: #{tpu_custom_call.1} parent=1 // pred_check
      _
    $region3: #{tpu_custom_call.1} parent=1 // pred_check_branch
      %12 = sbr.rel (0) target = $region5
    $region4: #{tpu_custom_call.1} parent=1 // pred_region
      %s14 = ssub.s32 128, 128
      %15 = vsyncadd [#allocation4], %s14
      %s17 = sshll.u32 [#allocation3], 4
      %s18 = int_to_ptr.vmem [resolvable:$true] %s17
      %20 = dma.hbm_to_vmem [thread:$0]  %s0, 128, %s18, [#allocation4]
    $region5: #{tpu_custom_call.1} parent=1 // pred_fallthru
      _
    // Predicated region
    $region6: #{tpu_custom_call.1} parent=1 // pred_check
      _
    $region7: #{tpu_custom_call.1} parent=1 // pred_check_branch
      %22 = sbr.rel (0) target = $region9
    $region8: #{tpu_custom_call.1} parent=1 // pred_region
      _
    $region9: #{tpu_custom_call.1} parent=1 // pred_fallthru
      _
    // Predicated region
    $region10: #{tpu_custom_call.1} parent=1 // pred_check
      _
    $region11: #{tpu_custom_call.1} parent=1 // pred_check_branch
      %24 = sbr.rel (0) target = $region13
    $region12: #{tpu_custom_call.1} parent=1 // pred_region
      _
    $region13: #{tpu_custom_call.1} parent=1 // pred_fallthru
      _
    // Predicated region
    $region14: #{tpu_custom_call.1} parent=1 // pred_check
      _
    $region15: #{tpu_custom_call.1} parent=1 // pred_check_branch
      %26 = sbr.rel (0) target = $region17
    $region16: #{tpu_custom_call.1} parent=1 // pred_region
      %27 = dma.done [#allocation4], 128
    $region17: #{tpu_custom_call.1} parent=1 // pred_fallthru
      _
    %v28 = vld [vmem:[%s1] sm:$0x1]
    %v29 = vld [vmem:[#allocation3] sm:$0xff]
    %s30 = sld [smem:[#allocation2]]
    %v31 = vstv %s30
    %vm32 = vcmask 261120
    %v34 = vsel %vm32, %v28, 0
    %v37 = vsel %vm32, %v29, 0
    %39 = vmatprep.subr.mxu0 0.0
    %40 = vmatpush1.xpose.msra.mxu0 %v37
    %41 = vmatprep.subr.mxu0 0.0
    %42 = vmatpush1.xpose.msra.mxu0 0.0
    %43 = vmatprep.subr.mxu0 0.0
    %44 = vmatpush1.xpose.msra.mxu0 0.0
    %45 = vmatprep.subr.mxu0 0.0
    %46 = vmatpush1.xpose.msra.mxu0 0.0
    %47 = vmatprep.subr.mxu0 0.0
    %48 = vmatpush1.xpose.msra.mxu0 0.0
    %49 = vmatprep.subr.mxu0 0.0
    %50 = vmatpush1.xpose.msra.mxu0 0.0
    %51 = vmatprep.subr.mxu0 0.0
    %52 = vmatpush1.xpose.msra.mxu0 0.0
    %53 = vmatprep.subr.mxu0 0.0
    %54 = vmatpush1.xpose.msra.mxu0 0.0
    %55 = vmatprep.subr.mxu0 0.0
    %56 = vmatpush1.xpose.msra.mxu0 0.0
    %57 = vmatprep.subr.mxu0 0.0
    %58 = vmatpush1.xpose.msra.mxu0 0.0
    %59 = vmatprep.subr.mxu0 0.0
    %60 = vmatpush1.xpose.msra.mxu0 0.0
    %61 = vmatprep.subr.mxu0 0.0
    %62 = vmatpush1.xpose.msra.mxu0 0.0
    %63 = vmatprep.subr.mxu0 0.0
    %64 = vmatpush1.xpose.msra.mxu0 0.0
    %65 = vmatprep.subr.mxu0 0.0
    %66 = vmatpush1.xpose.msra.mxu0 0.0
    %67 = vmatprep.subr.mxu0 0.0
    %68 = vmatpush1.xpose.msra.mxu0 0.0
    %69 = vmatprep.subr.mxu0 0.0
    %70 = vmatpush1.xpose.msra.mxu0 0.0
    %71 = vmatprep.subr.mxu0 0.0
    %72 = vmatpush1.xpose.msra.mxu0 0.0
    %73 = vmatprep.subr.mxu0 0.0
    %74 = vmatpush1.xpose.msra.mxu0 0.0
    %75 = vmatprep.subr.mxu0 0.0
    %76 = vmatpush1.xpose.msra.mxu0 0.0
    %77 = vmatprep.subr.mxu0 0.0
    %78 = vmatpush1.xpose.msra.mxu0 0.0
    %79 = vmatprep.subr.mxu0 0.0
    %80 = vmatpush1.xpose.msra.mxu0 0.0
    %81 = vmatprep.subr.mxu0 0.0
    %82 = vmatpush1.xpose.msra.mxu0 0.0
    %83 = vmatprep.subr.mxu0 0.0
    %84 = vmatpush1.xpose.msra.mxu0 0.0
    %85 = vmatprep.subr.mxu0 0.0
    %86 = vmatpush1.xpose.msra.mxu0 0.0
    %87 = vmatprep.subr.mxu0 0.0
    %88 = vmatpush1.xpose.msra.mxu0 0.0
    %89 = vmatprep.subr.mxu0 0.0
    %90 = vmatpush1.xpose.msra.mxu0 0.0
    %91 = vmatprep.subr.mxu0 0.0
    %92 = vmatpush1.xpose.msra.mxu0 0.0
    %93 = vmatprep.subr.mxu0 0.0
    %94 = vmatpush1.xpose.msra.mxu0 0.0
    %95 = vmatprep.subr.mxu0 0.0
    %96 = vmatpush1.xpose.msra.mxu0 0.0
    %97 = vmatprep.subr.mxu0 0.0
    %98 = vmatpush1.xpose.msra.mxu0 0.0
    %99 = vmatprep.subr.mxu0 0.0
    %100 = vmatpush1.xpose.msra.mxu0 0.0
    %101 = vmatprep.subr.mxu0 0.0
    %102 = vmatpush1.xpose.msra.mxu0 0.0
    %103 = vmatprep.mubr.f32.mxu0 0.0
    %104 = vmatmul.mubr.f32.gmra.mrb[0].mxu0 %v34
    %v105 = vpop.f32.mrb[0].mxu0
    %v106 = vadd.f32 %v31, %v105
    %v107 = vpop.f32.mrb[0].mxu0
    %108 = vdwg.mxu0
    %vm109 = vcmask 57344
    %110 = vst.msk [vmem:[#allocation6] sm:$0x1] %vm109, %v106
    // Predicated region
    $region18: #{tpu_custom_call.1} parent=1 // pred_check
      _
    $region19: #{tpu_custom_call.1} parent=1 // pred_check_branch
      %112 = sbr.rel (0) target = $region21
    $region20: #{tpu_custom_call.1} parent=1 // pred_region
      %s114 = ssub.s32 16, 16
      %115 = vsyncadd [#allocation5], %s114
      %s117 = sshll.u32 [#allocation6], 4
      %s118 = int_to_ptr.vmem [resolvable:$true] %s117
      %120 = dma.vmem_to_hbm [thread:$0]  %s118, 16, %s3, [#allocation5]
    $region21: #{tpu_custom_call.1} parent=1 // pred_fallthru
      _
    // Predicated region
    $region22: #{tpu_custom_call.1} parent=1 // pred_check
      _
    $region23: #{tpu_custom_call.1} parent=1 // pred_check_branch
      %122 = sbr.rel (0) target = $region25
    $region24: #{tpu_custom_call.1} parent=1 // pred_region
      %123 = dma.done [#allocation5], 16
    $region25: #{tpu_custom_call.1} parent=1 // pred_fallthru
      _
    %124 = vsyncpa [#allocation4], 1
    %125 = vsyncpa [#allocation5], 1

</llo_original>
